<compile_context>
chip_gen: v7x
topology: tpu7x:2x2x1
jax: 0.10.0
libtpu: 0.0.40
codegen_flags: <defaults>
</compile_context>

<pallas_src>
import jax
import jax.numpy as jnp
from jax import lax
from jax.experimental import pallas as pl
from jax.experimental.pallas import tpu as pltpu

CLASSES = 9
EPSILON = 1e-7
LANE = 128
MAX_TILE_N = 65536  # lanes (batch elements) processed per grid step


def _round_up(x, m):
    return ((x + m - 1) // m) * m


def _custom_loss_kernel(x_ref, lab_ref, tp_ref, sp_ref, cnt_ref, ce_ref):
    # Grid = (num_splits [parallel], steps [arbitrary]); outputs are per-split accumulators.
    i = pl.program_id(1)

    @pl.when(i == 0)
    def _init():
        tp_ref[...] = jnp.zeros_like(tp_ref)
        sp_ref[...] = jnp.zeros_like(sp_ref)
        cnt_ref[...] = jnp.zeros_like(cnt_ref)
        ce_ref[...] = jnp.zeros_like(ce_ref)

    x = x_ref[...].astype(jnp.float32)        # (C, T)  classes on sublanes
    labels = lab_ref[...]                     # (1, T)  int32, -1 marks padded columns
    c, t = x.shape

    # --- numerically stable softmax over the (small) class axis ---
    m = jnp.max(x, axis=0, keepdims=True)                 # (1, T)
    xm = x - m                                            # (C, T)
    ex = jnp.exp(xm)                                      # (C, T)
    denom = jnp.sum(ex, axis=0, keepdims=True)            # (1, T)
    inv_denom = pl.reciprocal(denom)                      # exact reciprocal (EUP)
    p = ex * inv_denom                                    # softmax probs (C, T)

    # --- boolean one-hot mask via sublane iota (pad columns: label=-1 -> all False) ---
    class_iota = lax.broadcasted_iota(jnp.int32, (c, t), 0)
    mask = class_iota == labels                           # (C, T) bool
    valid = (labels >= 0).astype(jnp.float32)             # (1, T)

    # --- cross-entropy partial sum; the +m cancels: CE = log(denom) - (x[label] - m) ---
    picked = jnp.sum(jnp.where(mask, xm, 0.0), axis=0, keepdims=True)           # (1, T)
    ce_ref[...] += jnp.sum((jnp.log(denom) - picked) * valid, axis=1, keepdims=True)

    # --- soft-F1 partial stats: fp = sum_p - tp, fn = count - tp (done in finalize) ---
    tp_ref[...] += jnp.sum(jnp.where(mask, p, 0.0), axis=1, keepdims=True)       # (C, 1)
    # No valid mask here: each padded column adds exactly 1/CLASSES per class; the static
    # correction (n_pad - n)/CLASSES is subtracted in the JAX finalize.
    sp_ref[...] += jnp.sum(p, axis=1, keepdims=True)                             # (C, 1)
    cnt_ref[...] += jnp.sum(jnp.where(mask, 1.0, 0.0), axis=1, keepdims=True)    # (C, 1)


def custom_loss(y_pred, y_true, *, tile_n=None, num_splits=None):
    """y_pred: (N, C) float (any float dtype), y_true: (N,) int. Returns scalar f32.

    Call under jax.jit so the transpose/pad fuse into a single layout copy.
    """
    assert y_pred.ndim == 2
    assert y_true.ndim == 1
    n, c = y_pred.shape
    assert c == CLASSES

    # Lane-dense layout: classes on sublanes, batch on lanes. Keep caller dtype
    # (bf16 logits halve the dominant HBM stream; cast to f32 happens per-tile in-kernel).
    x_t = jnp.transpose(y_pred)                              # (C, N)
    labels = y_true.astype(jnp.int32).reshape(1, n)          # (1, N)

    n128 = _round_up(n, LANE)
    if tile_n is None:
        tile_n = min(n128, MAX_TILE_N)
    tile_n = _round_up(int(tile_n), LANE)
    if num_splits is None:
        # Use both TensorCores (v7x megacore) when there are at least two tiles of work.
        num_splits = 2 if n128 >= 2 * tile_n else 1
    num_splits = max(1, int(num_splits))

    n_pad = _round_up(n128, num_splits * tile_n)
    steps = n_pad // (num_splits * tile_n)

    if n_pad != n:
        x_t = jnp.pad(x_t, ((0, 0), (0, n_pad - n)))                             # zero logits
        labels = jnp.pad(labels, ((0, 0), (0, n_pad - n)), constant_values=-1)   # invalid

    def in_map(s, i):
        return (0, s * steps + i)

    def out_map(s, i):
        return (s, 0, 0)

    out_shapes = (
        jax.ShapeDtypeStruct((num_splits, CLASSES, 1), jnp.float32),  # tp per class
        jax.ShapeDtypeStruct((num_splits, CLASSES, 1), jnp.float32),  # sum softmax per class
        jax.ShapeDtypeStruct((num_splits, CLASSES, 1), jnp.float32),  # label count per class
        jax.ShapeDtypeStruct((num_splits, 1, 1), jnp.float32),        # cross-entropy sum
    )
    out_specs = [
        pl.BlockSpec((None, CLASSES, 1), out_map),
        pl.BlockSpec((None, CLASSES, 1), out_map),
        pl.BlockSpec((None, CLASSES, 1), out_map),
        pl.BlockSpec((None, 1, 1), out_map),
    ]

    tp_p, sp_p, cnt_p, ce_p = pl.pallas_call(
        _custom_loss_kernel,
        out_shape=out_shapes,
        grid_spec=pltpu.PrefetchScalarGridSpec(
            num_scalar_prefetch=0,
            grid=(num_splits, steps),
            in_specs=[
                pl.BlockSpec((CLASSES, tile_n), in_map),
                pl.BlockSpec((1, tile_n), in_map),
            ],
            out_specs=out_specs,
        ),
        compiler_params=pltpu.CompilerParams(
            dimension_semantics=("parallel", "arbitrary"),
            vmem_limit_bytes=32 * 1024 * 1024,
        ),
    )(x_t, labels)

    # --- tiny scalar finalize in plain JAX (combines per-TensorCore partials) ---
    eps = jnp.float32(EPSILON)
    tp = jnp.sum(tp_p, axis=0)[:, 0]                                   # (C,)
    sp = jnp.sum(sp_p, axis=0)[:, 0] - jnp.float32((n_pad - n) / CLASSES)
    cnt = jnp.sum(cnt_p, axis=0)[:, 0]
    ce_sum = jnp.sum(ce_p)

    fp = sp - tp
    fn = cnt - tp
    precision = tp / (tp + fp + eps)
    recall = tp / (tp + fn + eps)
    f1 = 2.0 * (precision * recall) / (precision + recall + eps)
    f1 = jnp.clip(f1, eps, 1.0 - eps)
    f1_loss = 1.0 - jnp.mean(f1)
    ce_loss = ce_sum / jnp.float32(n)
    return (f1_loss * 0.25 + ce_loss * 0.75).astype(jnp.float32)


def _reference_loss(y_pred, y_true):
    # Pure-JAX reference mirroring the PyTorch module (for sanity check).
    logits = y_pred.astype(jnp.float32)
    n, c = logits.shape
    logp = jax.nn.log_softmax(logits, axis=1)
    ce = -jnp.mean(logp[jnp.arange(n), y_true])
    onehot = jax.nn.one_hot(y_true, c, dtype=jnp.float32)
    p = jax.nn.softmax(logits, axis=1)
    tp = jnp.sum(onehot * p, axis=0)
    fp = jnp.sum((1.0 - onehot) * p, axis=0)
    fn = jnp.sum(onehot * (1.0 - p), axis=0)
    precision = tp / (tp + fp + EPSILON)
    recall = tp / (tp + fn + EPSILON)
    f1 = 2.0 * (precision * recall) / (precision + recall + EPSILON)
    f1 = jnp.clip(f1, EPSILON, 1.0 - EPSILON)
    f1_loss = 1.0 - jnp.mean(f1)
    return f1_loss * 0.25 + ce * 0.75


if __name__ == "__main__":
    key = jax.random.PRNGKey(0)
    k1, k2 = jax.random.split(key)
    N = 8
    y_pred = jax.random.normal(k1, (N, CLASSES), dtype=jnp.float32)
    y_true = jax.random.randint(k2, (N,), 0, CLASSES, dtype=jnp.int32)

    loss = jax.jit(custom_loss)(y_pred, y_true)
    jax.block_until_ready(loss)

    ref = _reference_loss(y_pred, y_true)
    assert jnp.allclose(loss, ref, atol=1e-5, rtol=1e-5), (loss, ref)

    print("KERNEL_OK")
</pallas_src>

<mosaic_0001>
module attributes {stable_mosaic.version = 11 : i64} {
  func.func @_custom_loss_kernel(%arg0: i32, %arg1: i32, %arg2: memref<9x128xf32, #tpu.memory_space<vmem>>, %arg3: memref<1x128xi32, #tpu.memory_space<vmem>>, %arg4: memref<1x9x1xf32, #tpu.memory_space<vmem>>, %arg5: memref<1x9x1xf32, #tpu.memory_space<vmem>>, %arg6: memref<1x9x1xf32, #tpu.memory_space<vmem>>, %arg7: memref<1x1x1xf32, #tpu.memory_space<vmem>>) attributes {dimension_semantics = [#tpu.dimension_semantics<parallel>, #tpu.dimension_semantics<arbitrary>], iteration_bounds = array<i64: 1, 1>, scalar_prefetch = 0 : i64, scratch_operands = 0 : i64, tpu.core_type = #tpu.core_type<tc>, window_params = [{transform_indices = @transform_0, window_bounds = array<i64: 9, 128>}, {transform_indices = @transform_1, window_bounds = array<i64: 1, 128>}, {transform_indices = @transform_2, window_bounds = array<i64: 1, 9, 1>}, {transform_indices = @transform_3, window_bounds = array<i64: 1, 9, 1>}, {transform_indices = @transform_4, window_bounds = array<i64: 1, 9, 1>}, {transform_indices = @transform_5, window_bounds = array<i64: 1, 1, 1>}]} {
    %c0_i32 = arith.constant 0 : i32
    %0 = arith.cmpi eq, %arg1, %c0_i32 : i32
    %1 = arith.extui %0 : i1 to i32
    %c0_i32_0 = arith.constant 0 : i32
    %2 = arith.cmpi ne, %1, %c0_i32_0 : i32
    scf.if %2 {
      %cst_39 = arith.constant 0.000000e+00 : f32
      %66 = vector.broadcast %cst_39 : f32 to vector<9x1xf32>
      %c0_40 = arith.constant 0 : index
      %c0_41 = arith.constant 0 : index
      %c0_42 = arith.constant 0 : index
      %67 = vector.load %arg4[%c0_40, %c0_41, %c0_42] : memref<1x9x1xf32, #tpu.memory_space<vmem>>, vector<1x9x1xf32>
      %68 = vector.shape_cast %67 : vector<1x9x1xf32> to vector<9x1xf32>
      %69 = vector.shape_cast %66 : vector<9x1xf32> to vector<1x9x1xf32>
      tpu.vector_store %arg4[%c0_40, %c0_41, %c0_42], %69 {strides = array<i32>} : memref<1x9x1xf32, #tpu.memory_space<vmem>>, vector<1x9x1xf32>,
      %cst_43 = arith.constant 0.000000e+00 : f32
      %70 = vector.broadcast %cst_43 : f32 to vector<9x1xf32>
      %c0_44 = arith.constant 0 : index
      %c0_45 = arith.constant 0 : index
      %c0_46 = arith.constant 0 : index
      %71 = vector.load %arg5[%c0_44, %c0_45, %c0_46] : memref<1x9x1xf32, #tpu.memory_space<vmem>>, vector<1x9x1xf32>
      %72 = vector.shape_cast %71 : vector<1x9x1xf32> to vector<9x1xf32>
      %73 = vector.shape_cast %70 : vector<9x1xf32> to vector<1x9x1xf32>
      tpu.vector_store %arg5[%c0_44, %c0_45, %c0_46], %73 {strides = array<i32>} : memref<1x9x1xf32, #tpu.memory_space<vmem>>, vector<1x9x1xf32>,
      %cst_47 = arith.constant 0.000000e+00 : f32
      %74 = vector.broadcast %cst_47 : f32 to vector<9x1xf32>
      %c0_48 = arith.constant 0 : index
      %c0_49 = arith.constant 0 : index
      %c0_50 = arith.constant 0 : index
      %75 = vector.load %arg6[%c0_48, %c0_49, %c0_50] : memref<1x9x1xf32, #tpu.memory_space<vmem>>, vector<1x9x1xf32>
      %76 = vector.shape_cast %75 : vector<1x9x1xf32> to vector<9x1xf32>
      %77 = vector.shape_cast %74 : vector<9x1xf32> to vector<1x9x1xf32>
      tpu.vector_store %arg6[%c0_48, %c0_49, %c0_50], %77 {strides = array<i32>} : memref<1x9x1xf32, #tpu.memory_space<vmem>>, vector<1x9x1xf32>,
      %cst_51 = arith.constant 0.000000e+00 : f32
      %78 = vector.broadcast %cst_51 : f32 to vector<1x1xf32>
      %c0_52 = arith.constant 0 : index
      %c0_53 = arith.constant 0 : index
      %c0_54 = arith.constant 0 : index
      %79 = vector.load %arg7[%c0_52, %c0_53, %c0_54] : memref<1x1x1xf32, #tpu.memory_space<vmem>>, vector<1x1x1xf32>
      %80 = vector.shape_cast %79 : vector<1x1x1xf32> to vector<1x1xf32>
      %81 = vector.shape_cast %78 : vector<1x1xf32> to vector<1x1x1xf32>
      tpu.vector_store %arg7[%c0_52, %c0_53, %c0_54], %81 {strides = array<i32>} : memref<1x1x1xf32, #tpu.memory_space<vmem>>, vector<1x1x1xf32>,
    } else {
    }
    %c0 = arith.constant 0 : index
    %c0_1 = arith.constant 0 : index
    %3 = vector.load %arg2[%c0, %c0_1] : memref<9x128xf32, #tpu.memory_space<vmem>>, vector<9x128xf32>
    %c0_2 = arith.constant 0 : index
    %c0_3 = arith.constant 0 : index
    %4 = vector.load %arg3[%c0_2, %c0_3] : memref<1x128xi32, #tpu.memory_space<vmem>>, vector<1x128xi32>
    %cst = arith.constant dense<0xFF800000> : vector<128xf32>
    %5 = vector.multi_reduction <maximumf>, %3, %cst [0] : vector<9x128xf32> to vector<128xf32>
    %6 = vector.shape_cast %5 : vector<128xf32> to vector<1x128xf32>
    %7 = vector.broadcast %6 : vector<1x128xf32> to vector<9x128xf32>
    %8 = arith.subf %3, %7 : vector<9x128xf32>
    %9 = math.exp %8 : vector<9x128xf32>
    %cst_4 = arith.constant dense<0.000000e+00> : vector<128xf32>
    %10 = vector.multi_reduction <add>, %9, %cst_4 [0] : vector<9x128xf32> to vector<128xf32>
    %11 = vector.shape_cast %10 : vector<128xf32> to vector<1x128xf32>
    %12 = tpu.reciprocal %11 : vector<1x128xf32> -> vector<1x128xf32>
    %13 = vector.broadcast %12 : vector<1x128xf32> to vector<9x128xf32>
    %14 = arith.mulf %9, %13 : vector<9x128xf32>
    %15 = tpu.iota {dimensions = array<i32: 0>} : vector<9x128xi32>
    %16 = vector.broadcast %4 : vector<1x128xi32> to vector<9x128xi32>
    %17 = arith.cmpi eq, %15, %16 : vector<9x128xi32>
    %c0_i32_5 = arith.constant 0 : i32
    %18 = vector.broadcast %c0_i32_5 : i32 to vector<1x128xi32>
    %19 = arith.cmpi sge, %4, %18 : vector<1x128xi32>
    %20 = arith.extui %19 : vector<1x128xi1> to vector<1x128xi32>
    %21 = arith.sitofp %20 : vector<1x128xi32> to vector<1x128xf32>
    %cst_6 = arith.constant 0.000000e+00 : f32
    %22 = vector.broadcast %cst_6 : f32 to vector<9x128xf32>
    %23 = arith.select %17, %8, %22 : vector<9x128xi1>, vector<9x128xf32>
    %cst_7 = arith.constant dense<0.000000e+00> : vector<128xf32>
    %24 = vector.multi_reduction <add>, %23, %cst_7 [0] : vector<9x128xf32> to vector<128xf32>
    %25 = vector.shape_cast %24 : vector<128xf32> to vector<1x128xf32>
    %c0_8 = arith.constant 0 : index
    %c0_9 = arith.constant 0 : index
    %c0_10 = arith.constant 0 : index
    %26 = vector.load %arg7[%c0_8, %c0_9, %c0_10] : memref<1x1x1xf32, #tpu.memory_space<vmem>>, vector<1x1x1xf32>
    %27 = vector.shape_cast %26 : vector<1x1x1xf32> to vector<1x1xf32>
    %28 = math.log %11 : vector<1x128xf32>
    %29 = arith.subf %28, %25 : vector<1x128xf32>
    %30 = arith.mulf %29, %21 : vector<1x128xf32>
    %cst_11 = arith.constant dense<0.000000e+00> : vector<1xf32>
    %31 = vector.multi_reduction <add>, %30, %cst_11 [1] : vector<1x128xf32> to vector<1xf32>
    %32 = vector.shape_cast %31 : vector<1xf32> to vector<1x1xf32>
    %33 = arith.addf %27, %32 : vector<1x1xf32>
    %c0_12 = arith.constant 0 : index
    %c0_13 = arith.constant 0 : index
    %c0_14 = arith.constant 0 : index
    %34 = vector.load %arg7[%c0_12, %c0_13, %c0_14] : memref<1x1x1xf32, #tpu.memory_space<vmem>>, vector<1x1x1xf32>
    %35 = vector.shape_cast %34 : vector<1x1x1xf32> to vector<1x1xf32>
    %36 = vector.shape_cast %33 : vector<1x1xf32> to vector<1x1x1xf32>
    tpu.vector_store %arg7[%c0_12, %c0_13, %c0_14], %36 {strides = array<i32>} : memref<1x1x1xf32, #tpu.memory_space<vmem>>, vector<1x1x1xf32>,
    %c0_15 = arith.constant 0 : index
    %c0_16 = arith.constant 0 : index
    %c0_17 = arith.constant 0 : index
    %37 = vector.load %arg4[%c0_15, %c0_16, %c0_17] : memref<1x9x1xf32, #tpu.memory_space<vmem>>, vector<1x9x1xf32>
    %38 = vector.shape_cast %37 : vector<1x9x1xf32> to vector<9x1xf32>
    %cst_18 = arith.constant 0.000000e+00 : f32
    %39 = vector.broadcast %cst_18 : f32 to vector<9x128xf32>
    %40 = arith.select %17, %14, %39 : vector<9x128xi1>, vector<9x128xf32>
    %cst_19 = arith.constant dense<0.000000e+00> : vector<9xf32>
    %41 = vector.multi_reduction <add>, %40, %cst_19 [1] : vector<9x128xf32> to vector<9xf32>
    %42 = vector.shape_cast %41 : vector<9xf32> to vector<9x1xf32>
    %43 = arith.addf %38, %42 : vector<9x1xf32>
    %c0_20 = arith.constant 0 : index
    %c0_21 = arith.constant 0 : index
    %c0_22 = arith.constant 0 : index
    %44 = vector.load %arg4[%c0_20, %c0_21, %c0_22] : memref<1x9x1xf32, #tpu.memory_space<vmem>>, vector<1x9x1xf32>
    %45 = vector.shape_cast %44 : vector<1x9x1xf32> to vector<9x1xf32>
    %46 = vector.shape_cast %43 : vector<9x1xf32> to vector<1x9x1xf32>
    tpu.vector_store %arg4[%c0_20, %c0_21, %c0_22], %46 {strides = array<i32>} : memref<1x9x1xf32, #tpu.memory_space<vmem>>, vector<1x9x1xf32>,
    %c0_23 = arith.constant 0 : index
    %c0_24 = arith.constant 0 : index
    %c0_25 = arith.constant 0 : index
    %47 = vector.load %arg5[%c0_23, %c0_24, %c0_25] : memref<1x9x1xf32, #tpu.memory_space<vmem>>, vector<1x9x1xf32>
    %48 = vector.shape_cast %47 : vector<1x9x1xf32> to vector<9x1xf32>
    %cst_26 = arith.constant dense<0.000000e+00> : vector<9xf32>
    %49 = vector.multi_reduction <add>, %14, %cst_26 [1] : vector<9x128xf32> to vector<9xf32>
    %50 = vector.shape_cast %49 : vector<9xf32> to vector<9x1xf32>
    %51 = arith.addf %48, %50 : vector<9x1xf32>
    %c0_27 = arith.constant 0 : index
    %c0_28 = arith.constant 0 : index
    %c0_29 = arith.constant 0 : index
    %52 = vector.load %arg5[%c0_27, %c0_28, %c0_29] : memref<1x9x1xf32, #tpu.memory_space<vmem>>, vector<1x9x1xf32>
    %53 = vector.shape_cast %52 : vector<1x9x1xf32> to vector<9x1xf32>
    %54 = vector.shape_cast %51 : vector<9x1xf32> to vector<1x9x1xf32>
    tpu.vector_store %arg5[%c0_27, %c0_28, %c0_29], %54 {strides = array<i32>} : memref<1x9x1xf32, #tpu.memory_space<vmem>>, vector<1x9x1xf32>,
    %c0_30 = arith.constant 0 : index
    %c0_31 = arith.constant 0 : index
    %c0_32 = arith.constant 0 : index
    %55 = vector.load %arg6[%c0_30, %c0_31, %c0_32] : memref<1x9x1xf32, #tpu.memory_space<vmem>>, vector<1x9x1xf32>
    %56 = vector.shape_cast %55 : vector<1x9x1xf32> to vector<9x1xf32>
    %cst_33 = arith.constant 1.000000e+00 : f32
    %cst_34 = arith.constant 0.000000e+00 : f32
    %57 = vector.broadcast %cst_33 : f32 to vector<9x128xf32>
    %58 = vector.broadcast %cst_34 : f32 to vector<9x128xf32>
    %59 = arith.select %17, %57, %58 : vector<9x128xi1>, vector<9x128xf32>
    %cst_35 = arith.constant dense<0.000000e+00> : vector<9xf32>
    %60 = vector.multi_reduction <add>, %59, %cst_35 [1] : vector<9x128xf32> to vector<9xf32>
    %61 = vector.shape_cast %60 : vector<9xf32> to vector<9x1xf32>
    %62 = arith.addf %56, %61 : vector<9x1xf32>
    %c0_36 = arith.constant 0 : index
    %c0_37 = arith.constant 0 : index
    %c0_38 = arith.constant 0 : index
    %63 = vector.load %arg6[%c0_36, %c0_37, %c0_38] : memref<1x9x1xf32, #tpu.memory_space<vmem>>, vector<1x9x1xf32>
    %64 = vector.shape_cast %63 : vector<1x9x1xf32> to vector<9x1xf32>
    %65 = vector.shape_cast %62 : vector<9x1xf32> to vector<1x9x1xf32>
    tpu.vector_store %arg6[%c0_36, %c0_37, %c0_38], %65 {strides = array<i32>} : memref<1x9x1xf32, #tpu.memory_space<vmem>>, vector<1x9x1xf32>,
    return
  }
  func.func @transform_0(%arg0: i32, %arg1: i32) -> (i32, i32) {
    %c1_i32 = arith.constant 1 : i32
    %0 = arith.muli %arg0, %c1_i32 : i32
    %1 = arith.addi %0, %arg1 : i32
    %c0_i32 = arith.constant 0 : i32
    %c0_i32_0 = arith.constant 0 : i32
    return %c0_i32, %1 : i32, i32
  }
  func.func @transform_1(%arg0: i32, %arg1: i32) -> (i32, i32) {
    %c1_i32 = arith.constant 1 : i32
    %0 = arith.muli %arg0, %c1_i32 : i32
    %1 = arith.addi %0, %arg1 : i32
    %c0_i32 = arith.constant 0 : i32
    %c0_i32_0 = arith.constant 0 : i32
    return %c0_i32, %1 : i32, i32
  }
  func.func @transform_2(%arg0: i32, %arg1: i32) -> (i32, i32, i32) {
    %c0_i32 = arith.constant 0 : i32
    %c0_i32_0 = arith.constant 0 : i32
    %c0_i32_1 = arith.constant 0 : i32
    return %arg0, %c0_i32, %c0_i32_0 : i32, i32, i32
  }
  func.func @transform_3(%arg0: i32, %arg1: i32) -> (i32, i32, i32) {
    %c0_i32 = arith.constant 0 : i32
    %c0_i32_0 = arith.constant 0 : i32
    %c0_i32_1 = arith.constant 0 : i32
    return %arg0, %c0_i32, %c0_i32_0 : i32, i32, i32
  }
  func.func @transform_4(%arg0: i32, %arg1: i32) -> (i32, i32, i32) {
    %c0_i32 = arith.constant 0 : i32
    %c0_i32_0 = arith.constant 0 : i32
    %c0_i32_1 = arith.constant 0 : i32
    return %arg0, %c0_i32, %c0_i32_0 : i32, i32, i32
  }
  func.func @transform_5(%arg0: i32, %arg1: i32) -> (i32, i32, i32) {
    %c0_i32 = arith.constant 0 : i32
    %c0_i32_0 = arith.constant 0 : i32
    %c0_i32_1 = arith.constant 0 : i32
    return %arg0, %c0_i32, %c0_i32_0 : i32, i32, i32
  }
}

</mosaic_0001>

<llo_original>
// kernel: custom_loss.1
$region0: #{custom_loss.1}
  #allocation0 [shape = 'u32[]', space=smem, size = 0x4, offset = 0x4, fixed_abs, tag = 'smem constant byte address 0x4 - core index']
  #allocation1 [shape = 'u32[144,128]{1,0:T(1,128)}', space=vmem, size = 0x12000, scoped, tag = 'internal scratch']
  %s0 = inlined_call_operand.vmem [shape: f32[9,128], index: 0, kind: input, shape index: {}]
  %s1 = inlined_call_operand.vmem [shape: s32[1,128], index: 1, kind: input, shape index: {}]
  %s2 = inlined_call_operand.vmem [shape: f32[1,9,1], index: 2, kind: output, shape index: {0}]
  %s3 = inlined_call_operand.vmem [shape: f32[1,9,1], index: 3, kind: output, shape index: {1}]
  %s4 = inlined_call_operand.vmem [shape: f32[1,9,1], index: 4, kind: output, shape index: {2}]
  %s5 = inlined_call_operand.hbm [shape: f32[1,1,1], index: 5, kind: output, shape index: {3}]
  %6 = xla_tuple %s2, %s3, %s4, %s5
  %s7 = sld [smem:[#allocation0]]
  $region46: #{custom_loss.1} parent=0
    _
  %s9 = ssub.s32 1, %s7
  %s10 = scalar_select 0, %s9, %s7
  $region1: #{custom_loss.1} parent=0
    #allocation2 [shape = 'u8[512]{0}', space=vmem, size = 0x400, scoped, tag = 'output window, operand 3, single buffered']
    #allocation3 [shape = 's32[1]{0}', space=sflag, size = 0x4, scoped, tag = 'scoped memory for custom_loss.1']
    %11 = vsyncpa [#allocation3], 0
    // Predicated region
    $region2: #{custom_loss.1} parent=1 // pred_check
      _
    $region3: #{custom_loss.1} parent=1 // pred_check_branch
      %13 = sbr.rel (0) target = $region5
    $region4: #{custom_loss.1} parent=1 // pred_region
      %s14 = sadd.s32 0, 0
      %p15 = scmp.lt.s32.totalorder %s14, 0
      %s16 = scalar_select %p15, %s14, 0
      %s17 = smul.addr %s16, 8
      %s18 = scalar_lea.vmem %s0, %s17
      %s19 = sadd.s32 0, 0
    $region5: #{custom_loss.1} parent=1 // pred_fallthru
      _
    // Predicated region
    $region6: #{custom_loss.1} parent=1 // pred_check
      _
    $region7: #{custom_loss.1} parent=1 // pred_check_branch
      %21 = sbr.rel (0) target = $region9
    $region8: #{custom_loss.1} parent=1 // pred_region
      %s22 = sadd.s32 0, 0
      %p23 = scmp.lt.s32.totalorder %s22, 0
      %s24 = scalar_select %p23, %s22, 0
      %s25 = scalar_lea.vmem %s1, %s24
      %s26 = sadd.s32 0, 0
    $region9: #{custom_loss.1} parent=1 // pred_fallthru
      _
    %s27 = sadd.s32 0, 0
    %p28 = scmp.lt.s32.totalorder %s27, 0
    %s29 = scalar_select %p28, %s27, 0
    %s30 = smul.addr %s29, 8
    %s31 = scalar_lea.vmem %s0, %s30
    %s32 = sadd.s32 0, 0
    %p33 = scmp.lt.s32.totalorder %s32, 0
    %s34 = scalar_select %p33, %s32, 0
    %s35 = scalar_lea.vmem %s1, %s34
    %s36 = sadd.s32 0, 0
    %p37 = scmp.lt.s32.totalorder %s36, 0
    %s38 = scalar_select %p37, %s36, 0
    %s39 = smul.addr %s38, 8
    %s40 = scalar_lea.vmem %s0, %s39
    %s41 = sadd.s32 0, 0
    %s42 = sadd.s32 0, 0
    %p43 = scmp.lt.s32.totalorder %s42, 0
    %s44 = scalar_select %p43, %s42, 0
    %s45 = scalar_lea.vmem %s1, %s44
    %s46 = sadd.s32 0, 0
    %p47 = scmp.eq.s32.totalorder 0, 0
    // Predicated region
    $region10: #{custom_loss.1} parent=1 // pred_check
      %p48 = pneg %p47
    $region11: #{custom_loss.1} parent=1 // pred_check_branch
      %50 = sbr.rel (%p48) target = $region13
    $region12: #{custom_loss.1} parent=1 // pred_region
      %vm51 = vcmask 7168
      %52 = vst.msk [vmem:[%s2] sm:$0xff] %vm51, 0.0
      %vm53 = vcmask 0
      %54 = vst.msk [vmem:[%s2 + $0x8] sm:$0x1] %vm53, 0.0
      %55 = vst.msk [vmem:[%s3] sm:$0xff] %vm51, 0.0
      %56 = vst.msk [vmem:[%s3 + $0x8] sm:$0x1] %vm53, 0.0
      %57 = vst.msk [vmem:[%s4] sm:$0xff] %vm51, 0.0
      %58 = vst.msk [vmem:[%s4 + $0x8] sm:$0x1] %vm53, 0.0
      %59 = vst.msk [vmem:[#allocation2] sm:$0x1] %vm53, 0.0
    $region13: #{custom_loss.1} parent=1 // pred_fallthru
      _
    %v60 = vld [vmem:[%s40] sm:$0xff]
    %v61 = vld [vmem:[%s40 + $0x8] sm:$0x1]
    %v62 = vld [vmem:[%s45] sm:$0x1]
    %vm63 = vcmask 1040384
    %v64 = vsel %vm63, %v61, -inf
    %v65 = vmax.f32 %v60, %v64
    %v66 = vrot.slane %v65, 4
    %v67 = vmax.f32 %v65, %v66
    %v68 = vrot.slane %v67, 2
    %v69 = vmax.f32 %v67, %v68
    %v70 = vrot.slane %v69, 1
    %v71 = vmax.f32 %v69, %v70
    %v72 = vsub.f32 %v60, %v71
    %v73 = vsub.f32 %v61, %v71
    %v74 = vmul.f32 %v72, 1.442695
    %v75 = vpow.pop %v74
    %v76 = vmul.f32 %v73, 1.442695
    %v77 = vpow.pop %v76
    %v78 = vsel %vm63, %v77, 0.0
    %v79 = vadd.f32 %v75, %v78
    %v80 = vrot.slane %v79, 4
    %v81 = vadd.f32 %v79, %v80
    %v82 = vrot.slane %v81, 2
    %v83 = vadd.f32 %v81, %v82
    %v84 = vrot.slane %v83, 1
    %v85 = vadd.f32 %v83, %v84
    %v86 = vrcp.pop %v85
    %v87 = vmul.f32 %v75, %v86
    %v88 = vmul.f32 %v77, %v86
    %v89 = vlaneseq
    %v90 = vshrl.u32 %v89, 7
    %v91 = vadd.s32 %v90, 8
    %v92 = vlaneseq
    %v93 = vshrl.u32 %v92, 7
    %v94 = vsub.s32 0, %v93
    %v95 = vrot.slane %v62, %v94
    %vm96 = vcmp.eq.s32.totalorder %v90, %v95
    %vm97 = vcmp.eq.s32.totalorder %v91, %v95
    %vm98 = vcmp.ge.s32.totalorder %v62, 0
    %v99 = vsel %vm98, 1, 0
    %v100 = vcvt.s32.f32 %v99
    %v101 = vsel %vm96, %v72, 0.0
    %v102 = vsel %vm97, %v73, 0.0
    %v103 = vsel %vm63, %v102, 0.0
    %v104 = vadd.f32 %v101, %v103
    %v105 = vrot.slane %v104, 4
    %v106 = vadd.f32 %v104, %v105
    %v107 = vrot.slane %v106, 2
    %v108 = vadd.f32 %v106, %v107
    %v109 = vrot.slane %v108, 1
    %v110 = vadd.f32 %v108, %v109
    %v111 = vld [vmem:[#allocation2] sm:$0x1]
    %v112 = vlog2.pop %v85
    %v113 = vmul.f32 %v112, 0.6931472
    %v114 = vsub.f32 %v113, %v110
    %v115 = vmul.f32 %v114, %v100
    %v116 = vsel %vm63, %v115, 0.0
    %117 = vadd.xlane.f32.xlu0 %v116
    %v118 = vpop.xlane.xlu0 %117
    %v119 = vadd.f32 %v111, %v118
    %vm120 = vcmask 0
    %121 = vst.msk [vmem:[#allocation2] sm:$0x1] %vm120, %v119
    %v122 = vld [vmem:[%s2] sm:$0xff]
    %v123 = vld [vmem:[%s2 + $0x8] sm:$0x1]
    %v124 = vsel %vm96, %v87, 0.0
    %v125 = vsel %vm97, %v88, 0.0
    %126 = vadd.xlane.f32.xlu0 %v124
    %v127 = vpop.xlane.xlu0 %126
    %v128 = vsel %vm63, %v125, 0.0
    %129 = vadd.xlane.f32.xlu0 %v128
    %v130 = vpop.xlane.xlu0 %129
    %v131 = vadd.f32 %v122, %v127
    %v132 = vadd.f32 %v123, %v130
    %vm133 = vcmask 7168
    %134 = vst.msk [vmem:[%s2] sm:$0xff] %vm133, %v131
    %135 = vst.msk [vmem:[%s2 + $0x8] sm:$0x1] %vm120, %v132
    %v136 = vld [vmem:[%s3] sm:$0xff]
    %v137 = vld [vmem:[%s3 + $0x8] sm:$0x1]
    %138 = vadd.xlane.f32.xlu0 %v87
    %v139 = vpop.xlane.xlu0 %138
    %v140 = vsel %vm63, %v88, 0.0
    %141 = vadd.xlane.f32.xlu0 %v140
    %v142 = vpop.xlane.xlu0 %141
    %v143 = vadd.f32 %v136, %v139
    %v144 = vadd.f32 %v137, %v142
    %145 = vst.msk [vmem:[%s3] sm:$0xff] %vm133, %v143
    %146 = vst.msk [vmem:[%s3 + $0x8] sm:$0x1] %vm120, %v144
    %v147 = vld [vmem:[%s4] sm:$0xff]
    %v148 = vld [vmem:[%s4 + $0x8] sm:$0x1]
    %v149 = vsel %vm96, 1.0, 0.0
    %v150 = vsel %vm97, 1.0, 0.0
    %151 = vadd.xlane.f32.xlu0 %v149
    %v152 = vpop.xlane.xlu0 %151
    %v153 = vsel %vm63, %v150, 0.0
    %154 = vadd.xlane.f32.xlu0 %v153
    %v155 = vpop.xlane.xlu0 %154
    %v156 = vadd.f32 %v147, %v152
    %v157 = vadd.f32 %v148, %v155
    %158 = vst.msk [vmem:[%s4] sm:$0xff] %vm133, %v156
    %159 = vst.msk [vmem:[%s4 + $0x8] sm:$0x1] %vm120, %v157
    // Predicated region
    $region14: #{custom_loss.1} parent=1 // pred_check
      _
    $region15: #{custom_loss.1} parent=1 // pred_check_branch
      %161 = sbr.rel (0) target = $region17
    $region16: #{custom_loss.1} parent=1 // pred_region
      _
    $region17: #{custom_loss.1} parent=1 // pred_fallthru
      _
    // Predicated region
    $region18: #{custom_loss.1} parent=1 // pred_check
      _
    $region19: #{custom_loss.1} parent=1 // pred_check_branch
      %163 = sbr.rel (0) target = $region21
    $region20: #{custom_loss.1} parent=1 // pred_region
      _
    $region21: #{custom_loss.1} parent=1 // pred_fallthru
      _
    // Predicated region
    $region22: #{custom_loss.1} parent=1 // pred_check
      _
    $region23: #{custom_loss.1} parent=1 // pred_check_branch
      %165 = sbr.rel (0) target = $region25
    $region24: #{custom_loss.1} parent=1 // pred_region
      _
    $region25: #{custom_loss.1} parent=1 // pred_fallthru
      _
    // Predicated region
    $region26: #{custom_loss.1} parent=1 // pred_check
      _
    $region27: #{custom_loss.1} parent=1 // pred_check_branch
      %167 = sbr.rel (0) target = $region29
    $region28: #{custom_loss.1} parent=1 // pred_region
      %s169 = ssub.s32 16, 16
      %170 = vsyncadd [#allocation3], %s169
      %s172 = sshll.u32 [#allocation2], 4
      %s173 = int_to_ptr.vmem [resolvable:$true] %s172
      %175 = dma.vmem_to_hbm [thread:$0]  %s173, 16, %s5, [#allocation3]
    $region29: #{custom_loss.1} parent=1 // pred_fallthru
      _
    // Predicated region
    $region30: #{custom_loss.1} parent=1 // pred_check
      _
    $region31: #{custom_loss.1} parent=1 // pred_check_branch
      %177 = sbr.rel (0) target = $region33
    $region32: #{custom_loss.1} parent=1 // pred_region
      _
    $region33: #{custom_loss.1} parent=1 // pred_fallthru
      _
    // Predicated region
    $region34: #{custom_loss.1} parent=1 // pred_check
      _
    $region35: #{custom_loss.1} parent=1 // pred_check_branch
      %179 = sbr.rel (0) target = $region37
    $region36: #{custom_loss.1} parent=1 // pred_region
      _
    $region37: #{custom_loss.1} parent=1 // pred_fallthru
      _
    // Predicated region
    $region38: #{custom_loss.1} parent=1 // pred_check
      _
    $region39: #{custom_loss.1} parent=1 // pred_check_branch
      %181 = sbr.rel (0) target = $region41
    $region40: #{custom_loss.1} parent=1 // pred_region
      _
    $region41: #{custom_loss.1} parent=1 // pred_fallthru
      _
    // Predicated region
    $region42: #{custom_loss.1} parent=1 // pred_check
      _
    $region43: #{custom_loss.1} parent=1 // pred_check_branch
      %183 = sbr.rel (0) target = $region45
    $region44: #{custom_loss.1} parent=1 // pred_region
      %184 = dma.done [#allocation3], 16
    $region45: #{custom_loss.1} parent=1 // pred_fallthru
      _
    %185 = vsyncpa [#allocation3], 1

</llo_original>
